<compile_context>
chip_gen: v7x
topology: tpu7x:2x2x1
jax: 0.10.0
libtpu: 0.0.40
codegen_flags: <defaults>
</compile_context>

<pallas_src>
import functools

import numpy as np
import jax
import jax.numpy as jnp
from jax.experimental import pallas as pl
from jax.experimental.pallas import tpu as pltpu

_LANE = 128
_BIG = 2**31 - 1                       # Python int sentinel ("no saturated element")
_VMEM_LIMIT = 48 * 1024 * 1024         # < 64 MiB physical on v7x; fine on v5e/v6e


def _pick_block_rows():
    """Tile height (rows of 128 lanes). Bigger on v7x to amortize per-step cost."""
    try:
        kind = jax.devices()[0].device_kind.lower()
    except Exception:
        kind = ""
    if "7" in kind:                    # v7x: ~3.2 TB/s HBM, 8 MiB f32 input tiles
        return 16384
    if "v5 lite" in kind or "v5e" in kind:
        return 4096
    return 8192


# --------- Pass A: per-block lane-wise first saturated (index, value) ------------
def _find_fill_kernel(tgt_ref, idx_ref, val_ref, *, thr, rows, bm):
    j = pl.program_id(0)
    nb = pl.num_programs(0)
    t = tgt_ref[...].astype(jnp.float32)
    row = jax.lax.broadcasted_iota(jnp.int32, (bm, _LANE), 0)
    col = jax.lax.broadcasted_iota(jnp.int32, (bm, _LANE), 1)
    gidx = (j * bm + row) * _LANE + col            # row-major flat index (prefix)

    def emit(sat):
        midx = jnp.where(sat, gidx, _BIG)
        lane_min = jnp.min(midx, axis=0, keepdims=True)           # (1, 128)
        pick = jnp.logical_and(sat, midx == lane_min)              # exactly one / lane
        lane_val = jnp.sum(jnp.where(pick, t, 0.0), axis=0, keepdims=True)
        idx_ref[...] = lane_min
        val_ref[...] = lane_val

    # Only the last block can overrun `rows`; all other blocks skip the mask.
    @pl.when(j == nb - 1)
    def _():
        emit(jnp.logical_and(t > thr, (j * bm + row) < rows))

    @pl.when(j != nb - 1)
    def _():
        emit(t > thr)


# --------- Pass B: masked fill + per-block |diff| lane partial sums ---------------
def _l1_fill_kernel(fill_ref, out_ref, tgt_ref, part_ref, *, thr, rows, bm):
    j = pl.program_id(0)
    nb = pl.num_programs(0)
    fill = fill_ref[0]                              # SMEM scalar
    t = tgt_ref[...].astype(jnp.float32)
    o = out_ref[...].astype(jnp.float32)
    # masked_fill(mask, value): if nothing is saturated the mask is all-False and
    # the fill value is never selected -> matches PyTorch's `if mask.any()`.
    diff = jnp.abs(jnp.where(t > thr, fill, o) - t)

    @pl.when(j == nb - 1)
    def _():
        row = jax.lax.broadcasted_iota(jnp.int32, (bm, _LANE), 0)
        valid = (j * bm + row) < rows
        part_ref[...] = jnp.sum(jnp.where(valid, diff, 0.0), axis=0, keepdims=True)

    @pl.when(j != nb - 1)
    def _():
        part_ref[...] = jnp.sum(diff, axis=0, keepdims=True)


def skip_saturation_l1_loss(output, target, step=0, *,
                            saturation_threshold=0.9999, weight=1.0,
                            block_rows=None):
    """Returns (loss, weight) matching SkipSaturationLoss.forward (L1 / 'mean')."""
    assert output.shape == target.shape
    n_total = int(np.prod(output.shape))
    assert n_total > 0
    thr = float(saturation_threshold)

    flat_o = output.reshape(-1)
    flat_t = target.reshape(-1)

    rows = n_total // _LANE
    rem = n_total - rows * _LANE

    # Very small inputs: lane-dense tiling doesn't apply, do it in XLA.
    if rows < 8:
        tf = flat_t.astype(jnp.float32)
        of = flat_o.astype(jnp.float32)
        mask = tf > thr
        value = tf[jnp.argmax(mask)]
        filled = jnp.where(jnp.logical_and(mask, jnp.any(mask)), value, of)
        return jnp.mean(jnp.abs(filled - tf)), jnp.float32(weight)

    # 128-aligned prefix is streamed by the kernels; the <=127-element ragged
    # tail is handled by a tiny XLA epilogue (no full-array jnp.pad copies).
    n_aligned = rows * _LANE
    if rem:
        pre_o, pre_t = flat_o[:n_aligned], flat_t[:n_aligned]
    else:
        pre_o, pre_t = flat_o, flat_t
    o2 = pre_o.reshape(rows, _LANE)
    t2 = pre_t.reshape(rows, _LANE)

    if block_rows is None:
        block_rows = _pick_block_rows()
    bm = max(8, (min(int(block_rows), rows) // 8) * 8)   # multiple of 8, <= rows
    nb = pl.cdiv(rows, bm)
    assert (nb * bm) * _LANE < 2**31, "int32 flat index would overflow"

    # ---- Pass A: stream `target` once; fully parallel, no carried scratch ----
    idx_part, val_part = pl.pallas_call(
        functools.partial(_find_fill_kernel, thr=thr, rows=rows, bm=bm),
        out_shape=(jax.ShapeDtypeStruct((nb, _LANE), jnp.int32),
                   jax.ShapeDtypeStruct((nb, _LANE), jnp.float32)),
        grid=(nb,),
        in_specs=[pl.BlockSpec((bm, _LANE), lambda j: (j, 0))],
        out_specs=(pl.BlockSpec((1, _LANE), lambda j: (j, 0)),
                   pl.BlockSpec((1, _LANE), lambda j: (j, 0))),
        compiler_params=pltpu.CompilerParams(
            dimension_semantics=("parallel",),
            vmem_limit_bytes=_VMEM_LIMIT),
        cost_estimate=pl.CostEstimate(flops=6 * n_aligned, transcendentals=0,
                                      bytes_accessed=4 * n_aligned + 8 * nb * _LANE),
    )(t2)

    # Global first (row-major) saturated value: argmin over the tiny partials.
    idx_flat = idx_part.reshape(-1)
    pos = jnp.argmin(idx_flat)
    prefix_has = idx_flat[pos] < _BIG
    fill = jnp.where(prefix_has, val_part.reshape(-1)[pos], 0.0)

    if rem:  # the tail may hold the only saturated elements
        t_tail = flat_t[n_aligned:].astype(jnp.float32)
        o_tail = flat_o[n_aligned:].astype(jnp.float32)
        sat_tail = t_tail > thr
        tail_fill = t_tail[jnp.argmax(sat_tail)]
        fill = jnp.where(prefix_has, fill,
                         jnp.where(jnp.any(sat_tail), tail_fill, 0.0))

    fill_arr = jnp.reshape(fill, (1,)).astype(jnp.float32)

    # ---- Pass B: stream `output` + `target` once; fully parallel grid ----
    partials = pl.pallas_call(
        functools.partial(_l1_fill_kernel, thr=thr, rows=rows, bm=bm),
        out_shape=jax.ShapeDtypeStruct((nb, _LANE), jnp.float32),
        grid=(nb,),
        in_specs=[pl.BlockSpec(memory_space=pltpu.MemorySpace.SMEM),   # fill value
                  pl.BlockSpec((bm, _LANE), lambda j: (j, 0)),
                  pl.BlockSpec((bm, _LANE), lambda j: (j, 0))],
        out_specs=pl.BlockSpec((1, _LANE), lambda j: (j, 0)),
        compiler_params=pltpu.CompilerParams(
            dimension_semantics=("parallel",),
            vmem_limit_bytes=_VMEM_LIMIT),
        cost_estimate=pl.CostEstimate(flops=5 * n_aligned, transcendentals=0,
                                      bytes_accessed=8 * n_aligned + 4 * nb * _LANE),
    )(fill_arr, o2, t2)

    total = jnp.sum(partials, dtype=jnp.float32)
    if rem:
        total = total + jnp.sum(jnp.abs(jnp.where(sat_tail, fill, o_tail) - t_tail),
                                dtype=jnp.float32)

    # TODO(synk): loss scheduler / per_channel_probability paths of the base Loss
    # class are config-disabled here; weight is returned unchanged, as in PyTorch.
    # TODO(synk): optional further win (3N -> ~2N HBM bytes): fuse both passes and
    # revisit only saturated blocks in a sparse scalar-prefetch correction pass.
    return total / jnp.float32(n_total), jnp.float32(weight)


def _reference(output, target, thr=0.9999):
    """Pure-JAX reference mirroring the PyTorch forward."""
    mask = target > thr
    flat_t = target.reshape(-1)
    value = flat_t[jnp.argmax(mask.reshape(-1))]     # first saturated value (row-major)
    filled = jnp.where(jnp.logical_and(mask, jnp.any(mask)), value, output)
    return jnp.mean(jnp.abs(filled - target))


if __name__ == "__main__":
    key = jax.random.PRNGKey(0)
    k1, k2, k3, k4 = jax.random.split(key, 4)

    # Case 1: 128-aligned shape with injected saturated pixels.
    N, C, H, W = 2, 4, 16, 16
    output = jax.random.uniform(k1, (N, C, H, W), dtype=jnp.float32)
    target = jax.random.uniform(k2, (N, C, H, W), dtype=jnp.float32)
    target = target.at[0, 1, 3, 7].set(1.0)
    target = target.at[1, 2, 9, 5].set(0.99995)
    target = target.at[1, 3, 0, 0].set(1.0)
    loss, weight = skip_saturation_l1_loss(output, target, step=0)
    loss = jax.block_until_ready(loss)
    ref = _reference(output, target)
    assert jnp.allclose(loss, ref, rtol=1e-5, atol=1e-6), (loss, ref)
    assert float(weight) == 1.0

    # Case 2: no saturated pixel anywhere (fill path must be a no-op).
    target2 = jax.random.uniform(k3, (N, C, H, W), dtype=jnp.float32) * 0.5
    loss2, _ = skip_saturation_l1_loss(output, target2, step=0)
    ref2 = _reference(output, target2)
    assert jnp.allclose(jax.block_until_ready(loss2), ref2, rtol=1e-5, atol=1e-6), (loss2, ref2)

    # Case 3: lane-misaligned size (ragged tail + partial last block), with the
    # only saturated element living in the tail.
    o3 = jax.random.uniform(k4, (3, 5, 7, 11), dtype=jnp.float32)
    t3 = jax.random.uniform(k1, (3, 5, 7, 11), dtype=jnp.float32) * 0.5
    t3 = t3.reshape(-1).at[-2].set(1.0).reshape(3, 5, 7, 11)
    loss3, _ = skip_saturation_l1_loss(o3, t3, step=0, block_rows=8)
    ref3 = _reference(o3, t3)
    assert jnp.allclose(jax.block_until_ready(loss3), ref3, rtol=1e-5, atol=1e-6), (loss3, ref3)

    print("KERNEL_OK")
</pallas_src>

<mosaic_0001>
module attributes {stable_mosaic.version = 11 : i64} {
  func.func @_find_fill_kernel(%arg0: i32, %arg1: memref<16x128xf32, #tpu.memory_space<vmem>>, %arg2: memref<1x128xi32, #tpu.memory_space<vmem>>, %arg3: memref<1x128xf32, #tpu.memory_space<vmem>>) attributes {dimension_semantics = [#tpu.dimension_semantics<parallel>], iteration_bounds = array<i64: 1>, scalar_prefetch = 0 : i64, scratch_operands = 0 : i64, tpu.core_type = #tpu.core_type<tc>, window_params = [{transform_indices = @transform_0, window_bounds = array<i64: 16, 128>}, {transform_indices = @transform_1, window_bounds = array<i64: 1, 128>}, {transform_indices = @transform_2, window_bounds = array<i64: 1, 128>}]} {
    %c0 = arith.constant 0 : index
    %c0_0 = arith.constant 0 : index
    %0 = vector.load %arg1[%c0, %c0_0] : memref<16x128xf32, #tpu.memory_space<vmem>>, vector<16x128xf32>
    %1 = tpu.iota {dimensions = array<i32: 0>} : vector<16x128xi32>
    %2 = tpu.iota {dimensions = array<i32: 1>} : vector<16x128xi32>
    %c16_i32 = arith.constant 16 : i32
    %3 = arith.muli %arg0, %c16_i32 : i32
    %4 = vector.broadcast %3 : i32 to vector<16x128xi32>
    %5 = arith.addi %4, %1 : vector<16x128xi32>
    %c128_i32 = arith.constant 128 : i32
    %6 = vector.broadcast %c128_i32 : i32 to vector<16x128xi32>
    %7 = arith.muli %5, %6 : vector<16x128xi32>
    %8 = arith.addi %7, %2 : vector<16x128xi32>
    %c0_i32 = arith.constant 0 : i32
    %9 = arith.cmpi eq, %arg0, %c0_i32 : i32
    %10 = arith.extui %9 : i1 to i32
    %c0_i32_1 = arith.constant 0 : i32
    %11 = arith.cmpi ne, %10, %c0_i32_1 : i32
    scf.if %11 {
      %cst = arith.constant 0.999899983 : f32
      %15 = vector.broadcast %cst : f32 to vector<16x128xf32>
      %16 = arith.cmpf ogt, %0, %15 : vector<16x128xf32>
      %c16_i32_4 = arith.constant 16 : i32
      %17 = arith.muli %arg0, %c16_i32_4 : i32
      %18 = vector.broadcast %17 : i32 to vector<16x128xi32>
      %19 = arith.addi %18, %1 : vector<16x128xi32>
      %c16_i32_5 = arith.constant 16 : i32
      %20 = vector.broadcast %c16_i32_5 : i32 to vector<16x128xi32>
      %21 = arith.cmpi slt, %19, %20 : vector<16x128xi32>
      %22 = arith.andi %16, %21 : vector<16x128xi1>
      %c2147483647_i32 = arith.constant 2147483647 : i32
      %23 = vector.broadcast %c2147483647_i32 : i32 to vector<16x128xi32>
      %24 = arith.select %22, %8, %23 : vector<16x128xi1>, vector<16x128xi32>
      %cst_6 = arith.constant dense<2147483647> : vector<128xi32>
      %25 = vector.multi_reduction <minsi>, %24, %cst_6 [0] : vector<16x128xi32> to vector<128xi32>
      %26 = vector.shape_cast %25 : vector<128xi32> to vector<1x128xi32>
      %27 = vector.broadcast %26 : vector<1x128xi32> to vector<16x128xi32>
      %28 = arith.cmpi eq, %24, %27 : vector<16x128xi32>
      %29 = arith.andi %22, %28 : vector<16x128xi1>
      %cst_7 = arith.constant 0.000000e+00 : f32
      %30 = vector.broadcast %cst_7 : f32 to vector<16x128xf32>
      %31 = arith.select %29, %0, %30 : vector<16x128xi1>, vector<16x128xf32>
      %cst_8 = arith.constant dense<0.000000e+00> : vector<128xf32>
      %32 = vector.multi_reduction <add>, %31, %cst_8 [0] : vector<16x128xf32> to vector<128xf32>
      %33 = vector.shape_cast %32 : vector<128xf32> to vector<1x128xf32>
      %c0_9 = arith.constant 0 : index
      %c0_10 = arith.constant 0 : index
      %34 = vector.load %arg2[%c0_9, %c0_10] : memref<1x128xi32, #tpu.memory_space<vmem>>, vector<1x128xi32>
      tpu.vector_store %arg2[%c0_9, %c0_10], %26 {strides = array<i32>} : memref<1x128xi32, #tpu.memory_space<vmem>>, vector<1x128xi32>,
      %c0_11 = arith.constant 0 : index
      %c0_12 = arith.constant 0 : index
      %35 = vector.load %arg3[%c0_11, %c0_12] : memref<1x128xf32, #tpu.memory_space<vmem>>, vector<1x128xf32>
      tpu.vector_store %arg3[%c0_11, %c0_12], %33 {strides = array<i32>} : memref<1x128xf32, #tpu.memory_space<vmem>>, vector<1x128xf32>,
    } else {
    }
    %c0_i32_2 = arith.constant 0 : i32
    %12 = arith.cmpi ne, %arg0, %c0_i32_2 : i32
    %13 = arith.extui %12 : i1 to i32
    %c0_i32_3 = arith.constant 0 : i32
    %14 = arith.cmpi ne, %13, %c0_i32_3 : i32
    scf.if %14 {
      %cst = arith.constant 0.999899983 : f32
      %15 = vector.broadcast %cst : f32 to vector<16x128xf32>
      %16 = arith.cmpf ogt, %0, %15 : vector<16x128xf32>
      %c2147483647_i32 = arith.constant 2147483647 : i32
      %17 = vector.broadcast %c2147483647_i32 : i32 to vector<16x128xi32>
      %18 = arith.select %16, %8, %17 : vector<16x128xi1>, vector<16x128xi32>
      %cst_4 = arith.constant dense<2147483647> : vector<128xi32>
      %19 = vector.multi_reduction <minsi>, %18, %cst_4 [0] : vector<16x128xi32> to vector<128xi32>
      %20 = vector.shape_cast %19 : vector<128xi32> to vector<1x128xi32>
      %21 = vector.broadcast %20 : vector<1x128xi32> to vector<16x128xi32>
      %22 = arith.cmpi eq, %18, %21 : vector<16x128xi32>
      %23 = arith.andi %16, %22 : vector<16x128xi1>
      %cst_5 = arith.constant 0.000000e+00 : f32
      %24 = vector.broadcast %cst_5 : f32 to vector<16x128xf32>
      %25 = arith.select %23, %0, %24 : vector<16x128xi1>, vector<16x128xf32>
      %cst_6 = arith.constant dense<0.000000e+00> : vector<128xf32>
      %26 = vector.multi_reduction <add>, %25, %cst_6 [0] : vector<16x128xf32> to vector<128xf32>
      %27 = vector.shape_cast %26 : vector<128xf32> to vector<1x128xf32>
      %c0_7 = arith.constant 0 : index
      %c0_8 = arith.constant 0 : index
      %28 = vector.load %arg2[%c0_7, %c0_8] : memref<1x128xi32, #tpu.memory_space<vmem>>, vector<1x128xi32>
      tpu.vector_store %arg2[%c0_7, %c0_8], %20 {strides = array<i32>} : memref<1x128xi32, #tpu.memory_space<vmem>>, vector<1x128xi32>,
      %c0_9 = arith.constant 0 : index
      %c0_10 = arith.constant 0 : index
      %29 = vector.load %arg3[%c0_9, %c0_10] : memref<1x128xf32, #tpu.memory_space<vmem>>, vector<1x128xf32>
      tpu.vector_store %arg3[%c0_9, %c0_10], %27 {strides = array<i32>} : memref<1x128xf32, #tpu.memory_space<vmem>>, vector<1x128xf32>,
    } else {
    }
    return
  }
  func.func @transform_0(%arg0: i32) -> (i32, i32) {
    %c0_i32 = arith.constant 0 : i32
    %c0_i32_0 = arith.constant 0 : i32
    return %arg0, %c0_i32 : i32, i32
  }
  func.func @transform_1(%arg0: i32) -> (i32, i32) {
    %c0_i32 = arith.constant 0 : i32
    %c0_i32_0 = arith.constant 0 : i32
    return %arg0, %c0_i32 : i32, i32
  }
  func.func @transform_2(%arg0: i32) -> (i32, i32) {
    %c0_i32 = arith.constant 0 : i32
    %c0_i32_0 = arith.constant 0 : i32
    return %arg0, %c0_i32 : i32, i32
  }
}

</mosaic_0001>

<llo_original>
// kernel: tpu_custom_call.1
$region0: #{tpu_custom_call.1}
  #allocation0 [shape = 'u32[]', space=smem, size = 0x4, offset = 0x4, fixed_abs, tag = 'smem constant byte address 0x4 - core index']
  #allocation1 [shape = 'u32[144,128]{1,0:T(1,128)}', space=vmem, size = 0x12000, scoped, tag = 'internal scratch']
  %s0 = inlined_call_operand.hbm [shape: f32[16,128], index: 0, kind: input, shape index: {}]
  %s1 = inlined_call_operand.hbm [shape: s32[1,128], index: 1, kind: output, shape index: {0}]
  %s2 = inlined_call_operand.hbm [shape: f32[1,128], index: 2, kind: output, shape index: {1}]
  %3 = xla_tuple %s1, %s2
  %s4 = sld [smem:[#allocation0]]
  $region34: #{tpu_custom_call.1} parent=0
    _
  %s6 = ssub.s32 1, %s4
  %s7 = scalar_select 0, %s6, %s4
  $region1: #{tpu_custom_call.1} parent=0
    #allocation2 [shape = 'u8[8192]{0}', space=vmem, size = 0x2000, scoped, tag = 'input window, operand 0, single buffered']
    #allocation3 [shape = 's32[1]{0}', space=sflag, size = 0x4, scoped, tag = 'scoped memory for tpu_custom_call.1']
    #allocation4 [shape = 's32[1]{0}', space=sflag, size = 0x4, scoped, tag = 'scoped memory for tpu_custom_call.1']
    #allocation5 [shape = 'u8[512]{0}', space=vmem, size = 0x400, scoped, tag = 'output window, operand 0, single buffered']
    #allocation6 [shape = 'u8[512]{0}', space=vmem, size = 0x400, scoped, tag = 'output window, operand 1, single buffered']
    #allocation7 [shape = 's32[1]{0}', space=sflag, size = 0x4, scoped, tag = 'scoped memory for tpu_custom_call.1']
    %8 = vsyncpa [#allocation3], 0
    %9 = vsyncpa [#allocation4], 0
    %10 = vsyncpa [#allocation7], 0
    // Predicated region
    $region2: #{tpu_custom_call.1} parent=1 // pred_check
      _
    $region3: #{tpu_custom_call.1} parent=1 // pred_check_branch
      %12 = sbr.rel (0) target = $region5
    $region4: #{tpu_custom_call.1} parent=1 // pred_region
      %s14 = ssub.s32 256, 256
      %15 = vsyncadd [#allocation3], %s14
      %s16 = sshll.u32 [#allocation2], 4
      %s17 = int_to_ptr.vmem [resolvable:$true] %s16
      %22 = dma.hbm_to_vmem [thread:$0]  %s0, 256, %s17, [#allocation3], 128, 128, 8
    $region5: #{tpu_custom_call.1} parent=1 // pred_fallthru
      _
    // Predicated region
    $region6: #{tpu_custom_call.1} parent=1 // pred_check
      _
    $region7: #{tpu_custom_call.1} parent=1 // pred_check_branch
      %24 = sbr.rel (0) target = $region9
    $region8: #{tpu_custom_call.1} parent=1 // pred_region
      %25 = dma.done [#allocation3], 256
    $region9: #{tpu_custom_call.1} parent=1 // pred_fallthru
      _
    %v26 = vld [vmem:[#allocation2] sm:$0xff]
    %v27 = vld [vmem:[#allocation2 + $0x8] sm:$0xff]
    %v28 = vlaneseq
    %v29 = vshrl.u32 %v28, 7
    %v30 = vadd.s32 %v29, 8
    %v31 = vlaneseq
    %v32 = vand.u32 %v31, 127
    %s33 = smul.u32 0, 16
    %v34 = vstv %s33
    %v35 = vadd.s32 %v34, %v29
    %v36 = vadd.s32 %v34, %v30
    %v37 = vmul.u32 %v35, 128
    %v38 = vmul.u32 %v36, 128
    %v39 = vadd.s32 %v37, %v32
    %v40 = vadd.s32 %v38, %v32
    %p41 = scmp.eq.s32.totalorder 0, 0
    // Predicated region
    $region10: #{tpu_custom_call.1} parent=1 // pred_check
      %p42 = pneg %p41
    $region11: #{tpu_custom_call.1} parent=1 // pred_check_branch
      %44 = sbr.rel (%p42) target = $region13
    $region12: #{tpu_custom_call.1} parent=1 // pred_region
      %vm45 = vcmp.gt.f32.partialorder %v26, 0.9999
      %vm46 = vcmp.gt.f32.partialorder %v27, 0.9999
      %vm47 = vcmp.lt.s32.totalorder %v35, 16
      %vm48 = vcmp.lt.s32.totalorder %v36, 16
      %vm49 = vmand %vm45, %vm47
      %vm50 = vmand %vm46, %vm48
      %v51 = vsel %vm49, %v39, 2147483647
      %v52 = vsel %vm50, %v40, 2147483647
      %vm53 = vcmp.lt.s32.totalorder %v51, %v52
      %v54 = vsel %vm53, %v51, %v52
      %v55 = vrot.slane %v54, 4
      %vm56 = vcmp.lt.s32.totalorder %v54, %v55
      %v57 = vsel %vm56, %v54, %v55
      %v58 = vrot.slane %v57, 2
      %vm59 = vcmp.lt.s32.totalorder %v57, %v58
      %v60 = vsel %vm59, %v57, %v58
      %v61 = vrot.slane %v60, 1
      %vm62 = vcmp.lt.s32.totalorder %v60, %v61
      %v63 = vsel %vm62, %v60, %v61
      %vm64 = vcmp.eq.s32.totalorder %v51, %v63
      %vm65 = vcmp.eq.s32.totalorder %v52, %v63
      %vm66 = vmand %vm49, %vm64
      %vm67 = vmand %vm50, %vm65
      %v68 = vsel %vm66, %v26, 0.0
      %v69 = vsel %vm67, %v27, 0.0
      %v70 = vadd.f32 %v68, %v69
      %v71 = vrot.slane %v70, 4
      %v72 = vadd.f32 %v70, %v71
      %v73 = vrot.slane %v72, 2
      %v74 = vadd.f32 %v72, %v73
      %v75 = vrot.slane %v74, 1
      %v76 = vadd.f32 %v74, %v75
      %77 = vst [vmem:[#allocation5] sm:$0x1] %v63
      %78 = vst [vmem:[#allocation6] sm:$0x1] %v76
    $region13: #{tpu_custom_call.1} parent=1 // pred_fallthru
      _
    %p79 = scmp.ne.s32.totalorder 0, 0
    // Predicated region
    $region14: #{tpu_custom_call.1} parent=1 // pred_check
      %p80 = pneg %p79
    $region15: #{tpu_custom_call.1} parent=1 // pred_check_branch
      %82 = sbr.rel (%p80) target = $region17
    $region16: #{tpu_custom_call.1} parent=1 // pred_region
      %vm83 = vcmp.gt.f32.partialorder %v26, 0.9999
      %vm84 = vcmp.gt.f32.partialorder %v27, 0.9999
      %v85 = vsel %vm83, %v39, 2147483647
      %v86 = vsel %vm84, %v40, 2147483647
      %vm87 = vcmp.lt.s32.totalorder %v85, %v86
      %v88 = vsel %vm87, %v85, %v86
      %v89 = vrot.slane %v88, 4
      %vm90 = vcmp.lt.s32.totalorder %v88, %v89
      %v91 = vsel %vm90, %v88, %v89
      %v92 = vrot.slane %v91, 2
      %vm93 = vcmp.lt.s32.totalorder %v91, %v92
      %v94 = vsel %vm93, %v91, %v92
      %v95 = vrot.slane %v94, 1
      %vm96 = vcmp.lt.s32.totalorder %v94, %v95
      %v97 = vsel %vm96, %v94, %v95
      %vm98 = vcmp.eq.s32.totalorder %v85, %v97
      %vm99 = vcmp.eq.s32.totalorder %v86, %v97
      %vm100 = vmand %vm83, %vm98
      %vm101 = vmand %vm84, %vm99
      %v102 = vsel %vm100, %v26, 0.0
      %v103 = vsel %vm101, %v27, 0.0
      %v104 = vadd.f32 %v102, %v103
      %v105 = vrot.slane %v104, 4
      %v106 = vadd.f32 %v104, %v105
      %v107 = vrot.slane %v106, 2
      %v108 = vadd.f32 %v106, %v107
      %v109 = vrot.slane %v108, 1
      %v110 = vadd.f32 %v108, %v109
      %111 = vst [vmem:[#allocation5] sm:$0x1] %v97
      %112 = vst [vmem:[#allocation6] sm:$0x1] %v110
    $region17: #{tpu_custom_call.1} parent=1 // pred_fallthru
      _
    // Predicated region
    $region18: #{tpu_custom_call.1} parent=1 // pred_check
      _
    $region19: #{tpu_custom_call.1} parent=1 // pred_check_branch
      %114 = sbr.rel (0) target = $region21
    $region20: #{tpu_custom_call.1} parent=1 // pred_region
      %s116 = ssub.s32 16, 16
      %117 = vsyncadd [#allocation4], %s116
      %s119 = sshll.u32 [#allocation5], 4
      %s120 = int_to_ptr.vmem [resolvable:$true] %s119
      %122 = dma.vmem_to_hbm [thread:$0]  %s120, 16, %s1, [#allocation4]
    $region21: #{tpu_custom_call.1} parent=1 // pred_fallthru
      _
    // Predicated region
    $region22: #{tpu_custom_call.1} parent=1 // pred_check
      _
    $region23: #{tpu_custom_call.1} parent=1 // pred_check_branch
      %124 = sbr.rel (0) target = $region25
    $region24: #{tpu_custom_call.1} parent=1 // pred_region
      %s126 = ssub.s32 16, 16
      %127 = vsyncadd [#allocation7], %s126
      %s129 = sshll.u32 [#allocation6], 4
      %s130 = int_to_ptr.vmem [resolvable:$true] %s129
      %132 = dma.vmem_to_hbm [thread:$0]  %s130, 16, %s2, [#allocation7]
    $region25: #{tpu_custom_call.1} parent=1 // pred_fallthru
      _
    // Predicated region
    $region26: #{tpu_custom_call.1} parent=1 // pred_check
      _
    $region27: #{tpu_custom_call.1} parent=1 // pred_check_branch
      %134 = sbr.rel (0) target = $region29
    $region28: #{tpu_custom_call.1} parent=1 // pred_region
      %135 = dma.done [#allocation4], 16
    $region29: #{tpu_custom_call.1} parent=1 // pred_fallthru
      _
    // Predicated region
    $region30: #{tpu_custom_call.1} parent=1 // pred_check
      _
    $region31: #{tpu_custom_call.1} parent=1 // pred_check_branch
      %137 = sbr.rel (0) target = $region33
    $region32: #{tpu_custom_call.1} parent=1 // pred_region
      %138 = dma.done [#allocation7], 16
    $region33: #{tpu_custom_call.1} parent=1 // pred_fallthru
      _
    %139 = vsyncpa [#allocation3], 1
    %140 = vsyncpa [#allocation4], 1
    %141 = vsyncpa [#allocation7], 1

</llo_original>
